<compile_context>
chip_gen: v5e
topology: v5e:2x2
jax: 0.10.0
libtpu: 0.0.40
codegen_flags: <defaults>
</compile_context>

<pallas_src>
import jax
import jax.numpy as jnp
from jax import lax
from jax.experimental import pallas as pl
from jax.experimental.pallas import tpu as pltpu


def rmlp_kernel(x_ref, w1_ref, b1_ref, w2_ref, b2_ref, o_ref):
    # x_ref: (B, L, C)   w1_ref: (D, L)   b1_ref: (D, 1)
    # w2_ref: (P, D)     b2_ref: (P, 1)   o_ref: (B, P, C)
    x = x_ref[...]                                           # (B, L, C) f32
    B, L, C = x.shape
    D = w1_ref.shape[0]
    P = w2_ref.shape[0]

    # --- per-(batch, channel) statistics over the time axis (axis=1) ---
    seq_mean = jnp.mean(x, axis=1, keepdims=True)            # (B, 1, C)
    diff = x - seq_mean
    # torch.var default is unbiased (divides by L-1)
    seq_var = jnp.sum(diff * diff, axis=1, keepdims=True) / (L - 1) + 1e-5
    inv_std = lax.rsqrt(seq_var)                             # (B, 1, C)
    std = seq_var * inv_std                                  # == sqrt(seq_var)
    xn = diff * inv_std                                      # (B, L, C)

    # --- MLP over the time axis; weights broadcast over the (tiny) batch dim ---
    w1 = jnp.broadcast_to(w1_ref[...], (B, D, L))            # leading-dim broadcast
    w2 = jnp.broadcast_to(w2_ref[...], (B, P, D))

    # h[b,d,c] = sum_l w1[d,l] * xn[b,l,c]   (standard MXU orientation, batch b)
    h = jnp.einsum('bdl,blc->bdc', w1, xn,
                   preferred_element_type=jnp.float32)       # (B, D, C)
    h = jnp.maximum(h + b1_ref[...], 0.0)                    # (D,1) broadcasts over C

    # y[b,p,c] = sum_d w2[p,d] * h[b,d,c]
    y = jnp.einsum('bpd,bdc->bpc', w2, h,
                   preferred_element_type=jnp.float32)       # (B, P, C)
    y = y + b2_ref[...]                                      # (P,1) broadcasts over C

    # --- de-normalize and store directly in the [B, P, C] output layout ---
    o_ref[...] = y * std + seq_mean


def rmlp_forward(x, w1, b1, w2, b2):
    """x: [B, L, C] f32; w1: [D, L]; b1: [D]; w2: [P, D]; b2: [P] (PyTorch layout).

    Returns y: [B, P, C] f32 with the same semantics as the PyTorch module.
    """
    B, L, C = x.shape
    D = w1.shape[0]
    P = w2.shape[0]

    assert L > 1, "unbiased variance over time requires seq_len > 1 (same as torch)"

    flops = 2 * B * C * (L * D + D * P)
    bytes_accessed = 4 * (B * L * C + D * L + D + P * D + P + B * P * C)

    vmem = pl.BlockSpec(memory_space=pltpu.MemorySpace.VMEM)

    return pl.pallas_call(
        rmlp_kernel,
        out_shape=jax.ShapeDtypeStruct((B, P, C), jnp.float32),
        in_specs=[vmem, vmem, vmem, vmem, vmem],
        out_specs=vmem,
        cost_estimate=pl.CostEstimate(
            flops=flops,
            transcendentals=B * C,          # one rsqrt per (batch, channel) row
            bytes_accessed=bytes_accessed),
    )(x, w1, b1.reshape(D, 1), w2, b2.reshape(P, 1))


def rmlp_reference(x, w1, b1, w2, b2):
    """Pure-JAX reference matching the PyTorch module (PyTorch weight layout)."""
    seq_mean = jnp.mean(x, axis=1, keepdims=True)
    seq_var = jnp.var(x, axis=1, keepdims=True, ddof=1) + 1e-5
    xn = (x - seq_mean) / jnp.sqrt(seq_var)
    xt = jnp.transpose(xn, (0, 2, 1))                  # (B, C, L)
    h = jax.nn.relu(xt @ w1.T + b1)                    # (B, C, D)
    y = h @ w2.T + b2                                  # (B, C, P)
    y = jnp.transpose(y, (0, 2, 1))                    # (B, P, C)
    return y * jnp.sqrt(seq_var) + seq_mean


if __name__ == "__main__":
    # configs: seq_len=16, pred_len=8, d_model=32; channels=4, batch=2
    B, L, C = 2, 16, 4
    D, P = 32, 8

    key = jax.random.PRNGKey(0)
    kx, k1, k2, k3, k4 = jax.random.split(key, 5)

    x = jax.random.normal(kx, (B, L, C), dtype=jnp.float32)

    # Deterministic parameter init, PyTorch nn.Linear layout and uniform bounds.
    bound1 = 1.0 / jnp.sqrt(L)
    w1 = jax.random.uniform(k1, (D, L), minval=-bound1, maxval=bound1,
                            dtype=jnp.float32)
    b1 = jax.random.uniform(k2, (D,), minval=-bound1, maxval=bound1,
                            dtype=jnp.float32)
    bound2 = 1.0 / jnp.sqrt(D)
    w2 = jax.random.uniform(k3, (P, D), minval=-bound2, maxval=bound2,
                            dtype=jnp.float32)
    b2 = jax.random.uniform(k4, (P,), minval=-bound2, maxval=bound2,
                            dtype=jnp.float32)

    out = rmlp_forward(x, w1, b1, w2, b2)
    jax.block_until_ready(out)

    ref = rmlp_reference(x, w1, b1, w2, b2)
    assert out.shape == (B, P, C), out.shape
    assert jnp.allclose(out, ref, atol=1e-5, rtol=1e-5), \
        float(jnp.max(jnp.abs(out - ref)))

    print("KERNEL_OK")
</pallas_src>

<mosaic_0001>
module attributes {stable_mosaic.version = 11 : i64} {
  func.func @rmlp_kernel(%arg0: memref<2x16x4xf32, #tpu.memory_space<vmem>>, %arg1: memref<32x16xf32, #tpu.memory_space<vmem>>, %arg2: memref<32x1xf32, #tpu.memory_space<vmem>>, %arg3: memref<8x32xf32, #tpu.memory_space<vmem>>, %arg4: memref<8x1xf32, #tpu.memory_space<vmem>>, %arg5: memref<2x8x4xf32, #tpu.memory_space<vmem>>) attributes {dimension_semantics = [], scalar_prefetch = 0 : i64, scratch_operands = 0 : i64, tpu.core_type = #tpu.core_type<tc>} {
    %c0 = arith.constant 0 : index
    %c0_0 = arith.constant 0 : index
    %c0_1 = arith.constant 0 : index
    %0 = vector.load %arg0[%c0, %c0_0, %c0_1] : memref<2x16x4xf32, #tpu.memory_space<vmem>>, vector<2x16x4xf32>
    %cst = arith.constant dense<0.000000e+00> : vector<2x4xf32>
    %1 = vector.multi_reduction <add>, %0, %cst [1] : vector<2x16x4xf32> to vector<2x4xf32>
    %2 = vector.shape_cast %1 : vector<2x4xf32> to vector<2x1x4xf32>
    %cst_2 = arith.constant 1.600000e+01 : f32
    %3 = vector.broadcast %cst_2 : f32 to vector<2x1x4xf32>
    %4 = arith.divf %2, %3 : vector<2x1x4xf32>
    %5 = vector.broadcast %4 : vector<2x1x4xf32> to vector<2x16x4xf32>
    %6 = arith.subf %0, %5 : vector<2x16x4xf32>
    %7 = arith.mulf %6, %6 : vector<2x16x4xf32>
    %cst_3 = arith.constant dense<0.000000e+00> : vector<2x4xf32>
    %8 = vector.multi_reduction <add>, %7, %cst_3 [1] : vector<2x16x4xf32> to vector<2x4xf32>
    %9 = vector.shape_cast %8 : vector<2x4xf32> to vector<2x1x4xf32>
    %cst_4 = arith.constant 1.500000e+01 : f32
    %10 = vector.broadcast %cst_4 : f32 to vector<2x1x4xf32>
    %11 = arith.divf %9, %10 : vector<2x1x4xf32>
    %cst_5 = arith.constant 9.99999974E-6 : f32
    %12 = vector.broadcast %cst_5 : f32 to vector<2x1x4xf32>
    %13 = arith.addf %11, %12 : vector<2x1x4xf32>
    %14 = math.rsqrt %13 : vector<2x1x4xf32>
    %15 = arith.mulf %13, %14 : vector<2x1x4xf32>
    %16 = vector.broadcast %14 : vector<2x1x4xf32> to vector<2x16x4xf32>
    %17 = arith.mulf %6, %16 : vector<2x16x4xf32>
    %c0_6 = arith.constant 0 : index
    %c0_7 = arith.constant 0 : index
    %18 = vector.load %arg1[%c0_6, %c0_7] : memref<32x16xf32, #tpu.memory_space<vmem>>, vector<32x16xf32>
    %19 = vector.shape_cast %18 : vector<32x16xf32> to vector<1x32x16xf32>
    %20 = vector.broadcast %19 : vector<1x32x16xf32> to vector<2x32x16xf32>
    %c0_8 = arith.constant 0 : index
    %c0_9 = arith.constant 0 : index
    %21 = vector.load %arg3[%c0_8, %c0_9] : memref<8x32xf32, #tpu.memory_space<vmem>>, vector<8x32xf32>
    %22 = vector.shape_cast %21 : vector<8x32xf32> to vector<1x8x32xf32>
    %23 = vector.broadcast %22 : vector<1x8x32xf32> to vector<2x8x32xf32>
    "tpu.trace_start"() <{level = 10 : i32, message = "bdl,blc->bdc"}> : () -> ()
    %cst_10 = arith.constant dense<0.000000e+00> : vector<2x32x4xf32>
    %24 = tpu.matmul %20, %17, %cst_10 {dimension_numbers = #tpu.dot_dimension_numbers<[2], [1], [1], [2], [0, 0, 0, 1, 1, 2], [0], [0]>} : vector<2x32x16xf32>, vector<2x16x4xf32>, vector<2x32x4xf32> -> vector<2x32x4xf32>
    "tpu.trace_stop"() : () -> ()
    %c0_11 = arith.constant 0 : index
    %c0_12 = arith.constant 0 : index
    %25 = vector.load %arg2[%c0_11, %c0_12] : memref<32x1xf32, #tpu.memory_space<vmem>>, vector<32x1xf32>
    %26 = vector.shape_cast %25 : vector<32x1xf32> to vector<1x32x1xf32>
    %27 = vector.broadcast %26 : vector<1x32x1xf32> to vector<2x32x4xf32>
    %28 = arith.addf %24, %27 : vector<2x32x4xf32>
    %cst_13 = arith.constant 0.000000e+00 : f32
    %29 = vector.broadcast %cst_13 : f32 to vector<2x32x4xf32>
    %30 = arith.maximumf %28, %29 : vector<2x32x4xf32>
    "tpu.trace_start"() <{level = 10 : i32, message = "bpd,bdc->bpc"}> : () -> ()
    %cst_14 = arith.constant dense<0.000000e+00> : vector<2x8x4xf32>
    %31 = tpu.matmul %23, %30, %cst_14 {dimension_numbers = #tpu.dot_dimension_numbers<[2], [1], [1], [2], [0, 0, 0, 1, 1, 2], [0], [0]>} : vector<2x8x32xf32>, vector<2x32x4xf32>, vector<2x8x4xf32> -> vector<2x8x4xf32>
    "tpu.trace_stop"() : () -> ()
    %c0_15 = arith.constant 0 : index
    %c0_16 = arith.constant 0 : index
    %32 = vector.load %arg4[%c0_15, %c0_16] : memref<8x1xf32, #tpu.memory_space<vmem>>, vector<8x1xf32>
    %33 = vector.shape_cast %32 : vector<8x1xf32> to vector<1x8x1xf32>
    %34 = vector.broadcast %33 : vector<1x8x1xf32> to vector<2x8x4xf32>
    %35 = arith.addf %31, %34 : vector<2x8x4xf32>
    %36 = vector.broadcast %15 : vector<2x1x4xf32> to vector<2x8x4xf32>
    %37 = arith.mulf %35, %36 : vector<2x8x4xf32>
    %38 = vector.broadcast %4 : vector<2x1x4xf32> to vector<2x8x4xf32>
    %39 = arith.addf %37, %38 : vector<2x8x4xf32>
    %c0_17 = arith.constant 0 : index
    %c0_18 = arith.constant 0 : index
    %c0_19 = arith.constant 0 : index
    %40 = vector.load %arg5[%c0_17, %c0_18, %c0_19] : memref<2x8x4xf32, #tpu.memory_space<vmem>>, vector<2x8x4xf32>
    tpu.vector_store %arg5[%c0_17, %c0_18, %c0_19], %39 {strides = array<i32>} : memref<2x8x4xf32, #tpu.memory_space<vmem>>, vector<2x8x4xf32>,
    return
  }
}

</mosaic_0001>

<llo_original>
// kernel: tpu_custom_call.1
$region0: #{tpu_custom_call.1}
  #allocation0 [shape = 'u32[]', space=smem, size = 0x4, offset = 0x4, fixed_abs, tag = 'smem constant byte address 0x4 - core index']
  #allocation1 [shape = 'u32[72,128]{1,0:T(1,128)}', space=vmem, size = 0x9000, scoped, tag = 'internal scratch']
  %s0 = inlined_call_operand.vmem [shape: f32[2,16,4], index: 0, kind: input, shape index: {}]
  %s1 = inlined_call_operand.vmem [shape: f32[32,16], index: 1, kind: input, shape index: {}]
  %s2 = inlined_call_operand.vmem [shape: f32[32,1], index: 2, kind: input, shape index: {}]
  %s3 = inlined_call_operand.vmem [shape: f32[8,32], index: 3, kind: input, shape index: {}]
  %s4 = inlined_call_operand.vmem [shape: f32[8,1], index: 4, kind: input, shape index: {}]
  %s5 = inlined_call_operand.vmem [shape: f32[2,8,4], index: 5, kind: output, shape index: {}]
  %s6 = sld [smem:[#allocation0]]
  $region30: #{tpu_custom_call.1} parent=0
    _
  %s8 = ssub.s32 1, %s6
  %s9 = scalar_select 0, %s8, %s6
  // Predicated region
  $region2: #{tpu_custom_call.1} parent=0 // pred_check
    _
  $region3: #{tpu_custom_call.1} parent=0 // pred_check_branch
    %11 = sbr.rel (0) target = $region5
  $region4: #{tpu_custom_call.1} parent=0 // pred_region
    _
  $region5: #{tpu_custom_call.1} parent=0 // pred_fallthru
    _
  // Predicated region
  $region6: #{tpu_custom_call.1} parent=0 // pred_check
    _
  $region7: #{tpu_custom_call.1} parent=0 // pred_check_branch
    %13 = sbr.rel (0) target = $region9
  $region8: #{tpu_custom_call.1} parent=0 // pred_region
    _
  $region9: #{tpu_custom_call.1} parent=0 // pred_fallthru
    _
  // Predicated region
  $region10: #{tpu_custom_call.1} parent=0 // pred_check
    _
  $region11: #{tpu_custom_call.1} parent=0 // pred_check_branch
    %15 = sbr.rel (0) target = $region13
  $region12: #{tpu_custom_call.1} parent=0 // pred_region
    _
  $region13: #{tpu_custom_call.1} parent=0 // pred_fallthru
    _
  // Predicated region
  $region14: #{tpu_custom_call.1} parent=0 // pred_check
    _
  $region15: #{tpu_custom_call.1} parent=0 // pred_check_branch
    %17 = sbr.rel (0) target = $region17
  $region16: #{tpu_custom_call.1} parent=0 // pred_region
    _
  $region17: #{tpu_custom_call.1} parent=0 // pred_fallthru
    _
  // Predicated region
  $region18: #{tpu_custom_call.1} parent=0 // pred_check
    _
  $region19: #{tpu_custom_call.1} parent=0 // pred_check_branch
    %19 = sbr.rel (0) target = $region21
  $region20: #{tpu_custom_call.1} parent=0 // pred_region
    _
  $region21: #{tpu_custom_call.1} parent=0 // pred_fallthru
    _
  %v20 = vld [vmem:[%s0] sm:$0xff]
  %v21 = vld [vmem:[%s0 + $0x8] sm:$0xff]
  %v22 = vld [vmem:[%s0 + $0x10] sm:$0xff]
  %v23 = vld [vmem:[%s0 + $0x18] sm:$0xff]
  %vm24 = vcmask 31744
  %v25 = vsel %vm24, %v20, 0.0
  %v26 = vsel %vm24, %v21, 0.0
  %v27 = vadd.f32 %v25, %v26
  %v28 = vrot.slane %v27, 4
  %v29 = vadd.f32 %v27, %v28
  %v30 = vrot.slane %v29, 2
  %v31 = vadd.f32 %v29, %v30
  %v32 = vrot.slane %v31, 1
  %v33 = vadd.f32 %v31, %v32
  %v34 = vsel %vm24, %v22, 0.0
  %v35 = vsel %vm24, %v23, 0.0
  %v36 = vadd.f32 %v34, %v35
  %v37 = vrot.slane %v36, 4
  %v38 = vadd.f32 %v36, %v37
  %v39 = vrot.slane %v38, 2
  %v40 = vadd.f32 %v38, %v39
  %v41 = vrot.slane %v40, 1
  %v42 = vadd.f32 %v40, %v41
  %v43 = vrcp.pop 16.0
  %v44 = vmul.f32 16.0, %v43
  %v45 = vsub.f32 1.0, %v44
  %v46 = vmul.f32 %v43, %v45
  %v47 = vadd.f32 %v43, %v46
  %vm48 = vweird.f32 %v43
  %v49 = vsel %vm48, %v43, %v47
  %v50 = vmul.f32 %v33, %v49
  %v51 = vmul.f32 %v42, %v49
  %v52 = vsub.f32 %v20, %v50
  %v53 = vsub.f32 %v21, %v50
  %v54 = vsub.f32 %v22, %v51
  %v55 = vsub.f32 %v23, %v51
  %v56 = vmul.f32 %v52, %v52
  %v57 = vmul.f32 %v53, %v53
  %v58 = vmul.f32 %v54, %v54
  %v59 = vmul.f32 %v55, %v55
  %v60 = vsel %vm24, %v56, 0.0
  %v61 = vsel %vm24, %v57, 0.0
  %v62 = vadd.f32 %v60, %v61
  %v63 = vrot.slane %v62, 4
  %v64 = vadd.f32 %v62, %v63
  %v65 = vrot.slane %v64, 2
  %v66 = vadd.f32 %v64, %v65
  %v67 = vrot.slane %v66, 1
  %v68 = vadd.f32 %v66, %v67
  %v69 = vsel %vm24, %v58, 0.0
  %v70 = vsel %vm24, %v59, 0.0
  %v71 = vadd.f32 %v69, %v70
  %v72 = vrot.slane %v71, 4
  %v73 = vadd.f32 %v71, %v72
  %v74 = vrot.slane %v73, 2
  %v75 = vadd.f32 %v73, %v74
  %v76 = vrot.slane %v75, 1
  %v77 = vadd.f32 %v75, %v76
  %v78 = vrcp.pop 15.0
  %v79 = vmul.f32 15.0, %v78
  %v80 = vsub.f32 1.0, %v79
  %v81 = vmul.f32 %v78, %v80
  %v82 = vadd.f32 %v78, %v81
  %vm83 = vweird.f32 %v78
  %v84 = vsel %vm83, %v78, %v82
  %v85 = vmul.f32 %v68, %v84
  %v86 = vmul.f32 %v77, %v84
  %v87 = vadd.f32 %v85, 1e-05
  %v88 = vadd.f32 %v86, 1e-05
  %v89 = vrsqrt.pop %v87
  %v90 = vmul.f32 %v89, %v87
  %v91 = vmul.f32 %v90, %v89
  %v92 = vmul.f32 0.5, %v91
  %v93 = vsub.f32 1.5, %v92
  %v94 = vmul.f32 %v89, %v93
  %vm95 = vweird.f32 %v87
  %vm96 = vweird.f32 %v89
  %vm97 = vmor %vm95, %vm96
  %v98 = vsel %vm97, %v89, %v94
  %v99 = vrsqrt.pop %v88
  %v100 = vmul.f32 %v99, %v88
  %v101 = vmul.f32 %v100, %v99
  %v102 = vmul.f32 0.5, %v101
  %v103 = vsub.f32 1.5, %v102
  %v104 = vmul.f32 %v99, %v103
  %vm105 = vweird.f32 %v88
  %vm106 = vweird.f32 %v99
  %vm107 = vmor %vm105, %vm106
  %v108 = vsel %vm107, %v99, %v104
  %v109 = vmul.f32 %v87, %v98
  %v110 = vmul.f32 %v88, %v108
  %v111 = vmul.f32 %v52, %v98
  %v112 = vmul.f32 %v53, %v98
  %v113 = vmul.f32 %v54, %v108
  %v114 = vmul.f32 %v55, %v108
  %v115 = vld [vmem:[%s1] sm:$0xff]
  %v116 = vld [vmem:[%s1 + $0x8] sm:$0xff]
  %v117 = vld [vmem:[%s1 + $0x10] sm:$0xff]
  %v118 = vld [vmem:[%s1 + $0x18] sm:$0xff]
  %v119 = vld [vmem:[%s3] sm:$0xff]
  %v120 = vld [vmem:[%s2] sm:$0xff]
  %v121 = vld [vmem:[%s2 + $0x8] sm:$0xff]
  %v122 = vld [vmem:[%s2 + $0x10] sm:$0xff]
  %v123 = vld [vmem:[%s2 + $0x18] sm:$0xff]
  %125 = vset.pattern.permute.xlu0 0
  %126 = vperm.xlu0 %125, %v120
  %v127 = vpop.permute.xlu0 %126
  %130 = vset.pattern.permute.xlu0 0
  %131 = vperm.xlu0 %130, %v121
  %v132 = vpop.permute.xlu0 %131
  %135 = vset.pattern.permute.xlu0 0
  %136 = vperm.xlu0 %135, %v122
  %v137 = vpop.permute.xlu0 %136
  %140 = vset.pattern.permute.xlu0 0
  %141 = vperm.xlu0 %140, %v123
  %v142 = vpop.permute.xlu0 %141
  %vm144 = vcmask 130048
  %v146 = vsel %vm144, %v115, 0
  %v149 = vsel %vm144, %v116, 0
  %v152 = vsel %vm144, %v117, 0
  %v155 = vsel %vm144, %v118, 0
  %157 = vmatpush.msra.mxu0 0.0
  %158 = vmatpush.msra.mxu0 0.0
  %159 = vmatpush.msra.mxu0 0.0
  %160 = vmatpush.msra.mxu0 0.0
  %161 = vmatpush.msra.mxu0 0.0
  %162 = vmatpush.msra.mxu0 0.0
  %163 = vmatpush.msra.mxu0 0.0
  %164 = vmatpush.msra.mxu0 0.0
  %165 = vmatpush.msra.mxu0 0.0
  %166 = vmatpush.msra.mxu0 0.0
  %167 = vmatpush.msra.mxu0 0.0
  %168 = vmatpush.msra.mxu0 0.0
  %169 = vmatpush.msra.mxu0 0.0
  %170 = vmatpush.msra.mxu0 0.0
  %171 = vmatpush.msra.mxu0 %v112
  %172 = vmatpush.msra.mxu0 %v111
  %173 = vmatmul.f32.gmra.mxu0 %v146
  %v174 = vpop.f32.mrf.mxu0
  %v175 = vadd.f32 %v127, %v174
  %176 = vmatmul.f32.gmra.mxu0 %v149
  %v177 = vpop.f32.mrf.mxu0
  %v178 = vadd.f32 %v132, %v177
  %179 = vmatmul.f32.gmra.mxu0 %v152
  %v180 = vpop.f32.mrf.mxu0
  %v181 = vadd.f32 %v137, %v180
  %182 = vmatmul.f32.gmra.mxu0 %v155
  %v183 = vpop.f32.mrf.mxu0
  %v184 = vadd.f32 %v142, %v183
  %185 = vdwg.mxu0
  %186 = vmatpush.msra.mxu0 0.0
  %187 = vmatpush.msra.mxu0 0.0
  %188 = vmatpush.msra.mxu0 0.0
  %189 = vmatpush.msra.mxu0 0.0
  %190 = vmatpush.msra.mxu0 0.0
  %191 = vmatpush.msra.mxu0 0.0
  %192 = vmatpush.msra.mxu0 0.0
  %193 = vmatpush.msra.mxu0 0.0
  %194 = vmatpush.msra.mxu0 0.0
  %195 = vmatpush.msra.mxu0 0.0
  %196 = vmatpush.msra.mxu0 0.0
  %197 = vmatpush.msra.mxu0 0.0
  %198 = vmatpush.msra.mxu0 0.0
  %199 = vmatpush.msra.mxu0 0.0
  %200 = vmatpush.msra.mxu0 %v114
  %201 = vmatpush.msra.mxu0 %v113
  %202 = vmatmul.f32.gmra.mxu0 %v146
  %v203 = vpop.f32.mrf.mxu0
  %v204 = vadd.f32 %v127, %v203
  %205 = vmatmul.f32.gmra.mxu0 %v149
  %v206 = vpop.f32.mrf.mxu0
  %v207 = vadd.f32 %v132, %v206
  %208 = vmatmul.f32.gmra.mxu0 %v152
  %v209 = vpop.f32.mrf.mxu0
  %v210 = vadd.f32 %v137, %v209
  %211 = vmatmul.f32.gmra.mxu0 %v155
  %v212 = vpop.f32.mrf.mxu0
  %v213 = vadd.f32 %v142, %v212
  %214 = vdwg.mxu0
  %v215 = vmax.f32 %v175, 0.0
  %v216 = vmax.f32 %v178, 0.0
  %v217 = vmax.f32 %v181, 0.0
  %v218 = vmax.f32 %v184, 0.0
  %v219 = vmax.f32 %v204, 0.0
  %v220 = vmax.f32 %v207, 0.0
  %v221 = vmax.f32 %v210, 0.0
  %v222 = vmax.f32 %v213, 0.0
  %v223 = vld [vmem:[%s4] sm:$0xff]
  %225 = vset.pattern.permute.xlu0 0
  %226 = vperm.xlu0 %225, %v223
  %v227 = vpop.permute.xlu0 %226
  %vm229 = vcmask 261120
  %v231 = vsel %vm229, %v119, 0
  %233 = vmatpush.msra.mxu0 0.0
  %234 = vmatpush.msra.mxu0 0.0
  %235 = vmatpush.msra.mxu0 0.0
  %236 = vmatpush.msra.mxu0 0.0
  %237 = vmatpush.msra.mxu0 0.0
  %238 = vmatpush.msra.mxu0 0.0
  %239 = vmatpush.msra.mxu0 0.0
  %240 = vmatpush.msra.mxu0 0.0
  %241 = vmatpush.msra.mxu0 0.0
  %242 = vmatpush.msra.mxu0 0.0
  %243 = vmatpush.msra.mxu0 0.0
  %244 = vmatpush.msra.mxu0 0.0
  %245 = vmatpush.msra.mxu0 %v218
  %246 = vmatpush.msra.mxu0 %v217
  %247 = vmatpush.msra.mxu0 %v216
  %248 = vmatpush.msra.mxu0 %v215
  %249 = vmatmul.f32.gmra.mxu0 %v231
  %v250 = vpop.f32.mrf.mxu0
  %v251 = vadd.f32 %v227, %v250
  %252 = vdwg.mxu0
  %253 = vmatpush.msra.mxu0 0.0
  %254 = vmatpush.msra.mxu0 0.0
  %255 = vmatpush.msra.mxu0 0.0
  %256 = vmatpush.msra.mxu0 0.0
  %257 = vmatpush.msra.mxu0 0.0
  %258 = vmatpush.msra.mxu0 0.0
  %259 = vmatpush.msra.mxu0 0.0
  %260 = vmatpush.msra.mxu0 0.0
  %261 = vmatpush.msra.mxu0 0.0
  %262 = vmatpush.msra.mxu0 0.0
  %263 = vmatpush.msra.mxu0 0.0
  %264 = vmatpush.msra.mxu0 0.0
  %265 = vmatpush.msra.mxu0 %v222
  %266 = vmatpush.msra.mxu0 %v221
  %267 = vmatpush.msra.mxu0 %v220
  %268 = vmatpush.msra.mxu0 %v219
  %269 = vmatmul.f32.gmra.mxu0 %v231
  %v270 = vpop.f32.mrf.mxu0
  %v271 = vadd.f32 %v227, %v270
  %272 = vdwg.mxu0
  %v273 = vmul.f32 %v251, %v109
  %v274 = vmul.f32 %v271, %v110
  %v275 = vadd.f32 %v273, %v50
  %v276 = vadd.f32 %v274, %v51
  %277 = vst.msk [vmem:[%s5] sm:$0xff] %vm24, %v275
  %278 = vst.msk [vmem:[%s5 + $0x8] sm:$0xff] %vm24, %v276
  // Predicated region
  $region22: #{tpu_custom_call.1} parent=0 // pred_check
    _
  $region23: #{tpu_custom_call.1} parent=0 // pred_check_branch
    %280 = sbr.rel (0) target = $region25
  $region24: #{tpu_custom_call.1} parent=0 // pred_region
    _
  $region25: #{tpu_custom_call.1} parent=0 // pred_fallthru
    _
  // Predicated region
  $region26: #{tpu_custom_call.1} parent=0 // pred_check
    _
  $region27: #{tpu_custom_call.1} parent=0 // pred_check_branch
    %282 = sbr.rel (0) target = $region29
  $region28: #{tpu_custom_call.1} parent=0 // pred_region
    _
  $region29: #{tpu_custom_call.1} parent=0 // pred_fallthru
    _

</llo_original>
